<compile_context>
chip_gen: v5e
topology: v5e:2x2
jax: 0.10.0
libtpu: 0.0.40
codegen_flags: <defaults>
</compile_context>

<pallas_src>
import jax
import jax.numpy as jnp
from jax.experimental import pallas as pl
from jax.experimental.pallas import tpu as pltpu


def gmf_kernel(b_ref, uid_ref, iid_ref, utab_ref, itab_ref, w_ref, o_ref):
    # b_ref:    (1,)          bias (SMEM)
    # uid_ref:  (1, tb)       int32 user ids for this batch tile (lane-dense)
    # iid_ref:  (1, tb)       int32 item ids for this batch tile
    # utab_ref: (F, n_users)  transposed user embedding table (VMEM resident)
    # itab_ref: (F, n_items)  transposed item embedding table (VMEM resident)
    # w_ref:    (F, 1)        Linear weight column (VMEM resident)
    # o_ref:    (1, tb)       sigmoid scores, batch on the 128-lane axis
    f, n_users = utab_ref.shape
    _, n_items = itab_ref.shape
    tb = uid_ref.shape[1]

    uid = uid_ref[...]                                    # (1, tb) int32
    iid = iid_ref[...]

    # In-kernel embedding gather as a one-hot MXU contraction (tables are tiny
    # and VMEM resident).  One-hot is built with the table-row index on the
    # sublane axis so the gathered result lands directly as (F, tb): batch
    # stays on lanes end to end.  HIGHEST precision keeps the f32 row values
    # exact through the MXU.
    u_oh = (jax.lax.broadcasted_iota(jnp.int32, (n_users, tb), 0) == uid
            ).astype(jnp.float32)                          # (n_users, tb)
    i_oh = (jax.lax.broadcasted_iota(jnp.int32, (n_items, tb), 0) == iid
            ).astype(jnp.float32)                          # (n_items, tb)
    u_t = jax.lax.dot_general(
        utab_ref[...], u_oh, (((1,), (0,)), ((), ())),
        precision=jax.lax.Precision.HIGHEST,
        preferred_element_type=jnp.float32)                # (F, tb)
    i_t = jax.lax.dot_general(
        itab_ref[...], i_oh, (((1,), (0,)), ((), ())),
        precision=jax.lax.Precision.HIGHEST,
        preferred_element_type=jnp.float32)                # (F, tb)

    # GMF product + Linear(F->1) as a w-weighted sublane reduction (XLU, f32).
    x = jnp.sum(u_t * i_t * w_ref[...], axis=0, keepdims=True)   # (1, tb)
    x = x + b_ref[0]
    o_ref[...] = jax.nn.sigmoid(x).astype(o_ref.dtype)


def _pick_tile(batch):
    """Pick (tb, padded_batch).

    tb is a multiple of 128 (lane-dense blocks), capped at 8192 so the
    per-step in-kernel working set stays at a few MiB on every generation.
    For mid-sized batches we prefer exactly 2 grid steps so the "parallel"
    grid axis can be split across v7x's two TensorCores.  The batch is padded
    up to a tile multiple in the wrapper (ids padded with 0, output sliced),
    so no divisibility assert and no single giant full-array block.
    """
    cap = 8192
    b128 = ((max(batch, 1) + 127) // 128) * 128
    if b128 <= 128:
        tb = 128
    elif b128 <= 2 * cap:
        tb = ((b128 // 2) + 127) // 128 * 128      # two grid steps
    else:
        tb = cap
    padded = ((batch + tb - 1) // tb) * tb
    return tb, padded


def gmf_forward(user_ids, item_ids, user_emb, item_emb, h_w, h_b, *, tb=None):
    """Fused GMF forward: gather + u*i + Linear(F->1) + sigmoid. Returns (B,)."""
    B = user_ids.shape[0]
    n_users, F = user_emb.shape
    n_items = item_emb.shape[0]

    if tb is None:
        tb, padded_B = _pick_tile(B)
    else:
        assert tb % 128 == 0, "batch tile must be a multiple of 128"
        padded_B = ((B + tb - 1) // tb) * tb
    pad = padded_B - B

    # Lane-dense id blocks (pad with id 0 -> valid row; padded outputs sliced).
    uid = jnp.pad(user_ids.astype(jnp.int32), (0, pad)).reshape(1, padded_B)
    iid = jnp.pad(item_ids.astype(jnp.int32), (0, pad)).reshape(1, padded_B)

    # Tiny one-time transposes so gathered embeddings come out as (F, tb).
    utab_t = user_emb.astype(jnp.float32).T                # (F, n_users)
    itab_t = item_emb.astype(jnp.float32).T                # (F, n_items)
    w_col = h_w.astype(jnp.float32).reshape(F, 1)          # (F, 1)
    b = h_b.astype(jnp.float32).reshape(1)                 # (1,) SMEM scalar

    cost = pl.CostEstimate(
        flops=2 * padded_B * F * (n_users + n_items) + 3 * padded_B * F,
        transcendentals=padded_B,                          # sigmoid
        bytes_accessed=(2 * padded_B * 4                   # ids in
                        + padded_B * 4                     # scores out
                        + (n_users + n_items) * F * 4      # resident tables
                        + F * 4 + 4),                      # weight + bias
    )

    out = pl.pallas_call(
        gmf_kernel,
        out_shape=jax.ShapeDtypeStruct((1, padded_B), jnp.float32),
        grid_spec=pltpu.PrefetchScalarGridSpec(
            num_scalar_prefetch=0,
            grid=(padded_B // tb,),
            in_specs=[
                pl.BlockSpec(memory_space=pltpu.SMEM),          # bias (1,)
                pl.BlockSpec((1, tb), lambda n: (0, n)),        # user ids
                pl.BlockSpec((1, tb), lambda n: (0, n)),        # item ids
                pl.BlockSpec((F, n_users), lambda n: (0, 0)),   # user table (resident)
                pl.BlockSpec((F, n_items), lambda n: (0, 0)),   # item table (resident)
                pl.BlockSpec((F, 1), lambda n: (0, 0)),         # weight col (resident)
            ],
            out_specs=pl.BlockSpec((1, tb), lambda n: (0, n)),  # lane-dense scores
        ),
        compiler_params=pltpu.CompilerParams(
            dimension_semantics=("parallel",),
            vmem_limit_bytes=32 * 1024 * 1024,  # headroom; safe on v5e/v6e/v7x
        ),
        cost_estimate=cost,
    )(b, uid, iid, utab_t, itab_t, w_col)

    return out[0, :B]   # squeeze + drop batch padding -> (B,)


def gmf_reference(user_ids, item_ids, user_emb, item_emb, h_w, h_b):
    u = jnp.take(user_emb, user_ids, axis=0)
    i = jnp.take(item_emb, item_ids, axis=0)
    x = jnp.sum((u * i) * h_w[None, :], axis=-1) + h_b[0]
    return jax.nn.sigmoid(x)


if __name__ == "__main__":
    key = jax.random.PRNGKey(0)
    k_ue, k_ie, k_w, k_b = jax.random.split(key, 4)

    n_users, n_items, n_factors = 32, 64, 32

    # Deterministic parameter init (matching PyTorch init distributions).
    user_emb = jax.random.normal(k_ue, (n_users, n_factors), jnp.float32)  # N(0,1)
    item_emb = jax.random.normal(k_ie, (n_items, n_factors), jnp.float32)  # N(0,1)
    bound = 1.0 / (n_factors ** 0.5)
    h_w = jax.random.uniform(k_w, (n_factors,), jnp.float32, -bound, bound)
    h_b = jax.random.uniform(k_b, (1,), jnp.float32, -bound, bound)

    # B=8 exercises the padded single-block path; B=256 exercises a 2-step
    # parallel grid with 128-wide lane-dense blocks.
    for B in (8, 256):
        kb = jax.random.fold_in(key, B)
        k_u, k_i = jax.random.split(kb)
        user_ids = jax.random.randint(k_u, (B,), 0, n_users, jnp.int32)
        item_ids = jax.random.randint(k_i, (B,), 0, n_items, jnp.int32)

        out = gmf_forward(user_ids, item_ids, user_emb, item_emb, h_w, h_b)
        out = jax.block_until_ready(out)

        ref = gmf_reference(user_ids, item_ids, user_emb, item_emb, h_w, h_b)
        assert out.shape == (B,)
        assert jnp.allclose(out, ref, atol=1e-4, rtol=1e-4), (B, out, ref)

    print("KERNEL_OK")
</pallas_src>

<mosaic_0001>
module attributes {stable_mosaic.version = 11 : i64} {
  func.func @gmf_kernel(%arg0: i32, %arg1: memref<1xf32, #tpu.memory_space<smem>>, %arg2: memref<1x128xi32, #tpu.memory_space<vmem>>, %arg3: memref<1x128xi32, #tpu.memory_space<vmem>>, %arg4: memref<32x32xf32, #tpu.memory_space<vmem>>, %arg5: memref<32x64xf32, #tpu.memory_space<vmem>>, %arg6: memref<32x1xf32, #tpu.memory_space<vmem>>, %arg7: memref<1x128xf32, #tpu.memory_space<vmem>>) attributes {dimension_semantics = [#tpu.dimension_semantics<parallel>], iteration_bounds = array<i64: 1>, scalar_prefetch = 0 : i64, scratch_operands = 0 : i64, tpu.core_type = #tpu.core_type<tc>, window_params = [{transform_indices = @transform_0, window_bounds = array<i64: 1>}, {transform_indices = @transform_1, window_bounds = array<i64: 1, 128>}, {transform_indices = @transform_2, window_bounds = array<i64: 1, 128>}, {pipeline_mode = #tpu.pipeline_mode<synchronous>, transform_indices = @transform_3, window_bounds = array<i64: 32, 32>}, {pipeline_mode = #tpu.pipeline_mode<synchronous>, transform_indices = @transform_4, window_bounds = array<i64: 32, 64>}, {pipeline_mode = #tpu.pipeline_mode<synchronous>, transform_indices = @transform_5, window_bounds = array<i64: 32, 1>}, {transform_indices = @transform_6, window_bounds = array<i64: 1, 128>}]} {
    %c0 = arith.constant 0 : index
    %c0_0 = arith.constant 0 : index
    %0 = vector.load %arg2[%c0, %c0_0] : memref<1x128xi32, #tpu.memory_space<vmem>>, vector<1x128xi32>
    %c0_1 = arith.constant 0 : index
    %c0_2 = arith.constant 0 : index
    %1 = vector.load %arg3[%c0_1, %c0_2] : memref<1x128xi32, #tpu.memory_space<vmem>>, vector<1x128xi32>
    %2 = tpu.iota {dimensions = array<i32: 0>} : vector<32x128xi32>
    %3 = vector.broadcast %0 : vector<1x128xi32> to vector<32x128xi32>
    %4 = arith.cmpi eq, %2, %3 : vector<32x128xi32>
    %5 = arith.extui %4 : vector<32x128xi1> to vector<32x128xi32>
    %6 = arith.sitofp %5 : vector<32x128xi32> to vector<32x128xf32>
    %7 = tpu.iota {dimensions = array<i32: 0>} : vector<64x128xi32>
    %8 = vector.broadcast %1 : vector<1x128xi32> to vector<64x128xi32>
    %9 = arith.cmpi eq, %7, %8 : vector<64x128xi32>
    %10 = arith.extui %9 : vector<64x128xi1> to vector<64x128xi32>
    %11 = arith.sitofp %10 : vector<64x128xi32> to vector<64x128xf32>
    %c0_3 = arith.constant 0 : index
    %c0_4 = arith.constant 0 : index
    %12 = vector.load %arg4[%c0_3, %c0_4] : memref<32x32xf32, #tpu.memory_space<vmem>>, vector<32x32xf32>
    %cst = arith.constant dense<0.000000e+00> : vector<32x128xf32>
    %13 = tpu.matmul %12, %6, %cst {dimension_numbers = #tpu.dot_dimension_numbers<[1], [0], [0], [1], [0, 0, 1, 1], [], []>, precision = #tpu.contract_precision<fp32>} : vector<32x32xf32>, vector<32x128xf32>, vector<32x128xf32> -> vector<32x128xf32>
    %c0_5 = arith.constant 0 : index
    %c0_6 = arith.constant 0 : index
    %14 = vector.load %arg5[%c0_5, %c0_6] : memref<32x64xf32, #tpu.memory_space<vmem>>, vector<32x64xf32>
    %cst_7 = arith.constant dense<0.000000e+00> : vector<32x128xf32>
    %15 = tpu.matmul %14, %11, %cst_7 {dimension_numbers = #tpu.dot_dimension_numbers<[1], [0], [0], [1], [0, 0, 1, 1], [], []>, precision = #tpu.contract_precision<fp32>} : vector<32x64xf32>, vector<64x128xf32>, vector<32x128xf32> -> vector<32x128xf32>
    %16 = arith.mulf %13, %15 : vector<32x128xf32>
    %c0_8 = arith.constant 0 : index
    %c0_9 = arith.constant 0 : index
    %17 = vector.load %arg6[%c0_8, %c0_9] : memref<32x1xf32, #tpu.memory_space<vmem>>, vector<32x1xf32>
    %18 = vector.broadcast %17 : vector<32x1xf32> to vector<32x128xf32>
    %19 = arith.mulf %16, %18 : vector<32x128xf32>
    %cst_10 = arith.constant dense<0.000000e+00> : vector<128xf32>
    %20 = vector.multi_reduction <add>, %19, %cst_10 [0] : vector<32x128xf32> to vector<128xf32>
    %21 = vector.shape_cast %20 : vector<128xf32> to vector<1x128xf32>
    %c0_11 = arith.constant 0 : index
    %22 = memref.load %arg1[%c0_11] : memref<1xf32, #tpu.memory_space<smem>>
    %23 = vector.broadcast %22 : f32 to vector<1x128xf32>
    %24 = arith.addf %21, %23 : vector<1x128xf32>
    %25 = arith.negf %24 : vector<1x128xf32>
    %26 = math.exp %25 : vector<1x128xf32>
    %cst_12 = arith.constant 1.000000e+00 : f32
    %27 = vector.broadcast %cst_12 : f32 to vector<1x128xf32>
    %28 = arith.addf %27, %26 : vector<1x128xf32>
    %29 = arith.divf %27, %28 : vector<1x128xf32>
    %c0_13 = arith.constant 0 : index
    %c0_14 = arith.constant 0 : index
    %30 = vector.load %arg7[%c0_13, %c0_14] : memref<1x128xf32, #tpu.memory_space<vmem>>, vector<1x128xf32>
    tpu.vector_store %arg7[%c0_13, %c0_14], %29 {strides = array<i32>} : memref<1x128xf32, #tpu.memory_space<vmem>>, vector<1x128xf32>,
    return
  }
  func.func @transform_0(%arg0: i32) -> i32 {
    %c0_i32 = arith.constant 0 : i32
    %c0_i32_0 = arith.constant 0 : i32
    return %c0_i32 : i32
  }
  func.func @transform_1(%arg0: i32) -> (i32, i32) {
    %c0_i32 = arith.constant 0 : i32
    %c0_i32_0 = arith.constant 0 : i32
    return %c0_i32, %arg0 : i32, i32
  }
  func.func @transform_2(%arg0: i32) -> (i32, i32) {
    %c0_i32 = arith.constant 0 : i32
    %c0_i32_0 = arith.constant 0 : i32
    return %c0_i32, %arg0 : i32, i32
  }
  func.func @transform_3(%arg0: i32) -> (i32, i32) {
    %c0_i32 = arith.constant 0 : i32
    %c0_i32_0 = arith.constant 0 : i32
    %c0_i32_1 = arith.constant 0 : i32
    return %c0_i32, %c0_i32_0 : i32, i32
  }
  func.func @transform_4(%arg0: i32) -> (i32, i32) {
    %c0_i32 = arith.constant 0 : i32
    %c0_i32_0 = arith.constant 0 : i32
    %c0_i32_1 = arith.constant 0 : i32
    return %c0_i32, %c0_i32_0 : i32, i32
  }
  func.func @transform_5(%arg0: i32) -> (i32, i32) {
    %c0_i32 = arith.constant 0 : i32
    %c0_i32_0 = arith.constant 0 : i32
    %c0_i32_1 = arith.constant 0 : i32
    return %c0_i32, %c0_i32_0 : i32, i32
  }
  func.func @transform_6(%arg0: i32) -> (i32, i32) {
    %c0_i32 = arith.constant 0 : i32
    %c0_i32_0 = arith.constant 0 : i32
    return %c0_i32, %arg0 : i32, i32
  }
}

</mosaic_0001>

<llo_original>
// kernel: tpu_custom_call.1
$region0: #{tpu_custom_call.1}
  #allocation0 [shape = 'u32[]', space=smem, size = 0x4, offset = 0x4, fixed_abs, tag = 'smem constant byte address 0x4 - core index']
  #allocation1 [shape = 'u32[72,128]{1,0:T(1,128)}', space=vmem, size = 0x9000, scoped, tag = 'internal scratch']
  #allocation2 [shape = 'f32[1]{0:T(128)S(6)}', space=smem, size = 0x200, scoped, tag = 'scoped memory for tpu_custom_call.1']
  %s0 = inlined_call_operand.<no memory space> [shape: f32[1], index: 0, kind: input, shape index: {}]
  %s1 = inlined_call_operand.vmem [shape: s32[1,128], index: 1, kind: input, shape index: {}]
  %s2 = inlined_call_operand.vmem [shape: s32[1,128], index: 2, kind: input, shape index: {}]
  %s3 = inlined_call_operand.vmem [shape: f32[32,32], index: 3, kind: input, shape index: {}]
  %s4 = inlined_call_operand.hbm [shape: f32[32,64], index: 4, kind: input, shape index: {}]
  %s5 = inlined_call_operand.vmem [shape: f32[32,1], index: 5, kind: input, shape index: {}]
  %s6 = inlined_call_operand.hbm [shape: f32[1,128], index: 6, kind: output, shape index: {}]
  %s7 = sld [smem:[#allocation0]]
  $region38: #{tpu_custom_call.1} parent=0
    _
  %s9 = ssub.s32 1, %s7
  %s10 = scalar_select 0, %s9, %s7
  %11 = sst [smem:[#allocation2]] %s0
  $region1: #{tpu_custom_call.1} parent=0
    #allocation3 [shape = 'u8[16384]{0}', space=vmem, size = 0x4000, scoped, tag = 'input window, operand 4, single buffered']
    #allocation4 [shape = 's32[1]{0}', space=sflag, size = 0x4, scoped, tag = 'scoped memory for tpu_custom_call.1']
    #allocation5 [shape = 's32[1]{0}', space=sflag, size = 0x4, scoped, tag = 'scoped memory for tpu_custom_call.1']
    #allocation6 [shape = 'u8[512]{0}', space=vmem, size = 0x400, scoped, tag = 'output window, operand 0, single buffered']
    %12 = vsyncpa [#allocation4], 0
    %13 = vsyncpa [#allocation5], 0
    // Predicated region
    $region2: #{tpu_custom_call.1} parent=1 // pred_check
      _
    $region3: #{tpu_custom_call.1} parent=1 // pred_check_branch
      %15 = sbr.rel (0) target = $region5
    $region4: #{tpu_custom_call.1} parent=1 // pred_region
      _
    $region5: #{tpu_custom_call.1} parent=1 // pred_fallthru
      _
    // Predicated region
    $region6: #{tpu_custom_call.1} parent=1 // pred_check
      _
    $region7: #{tpu_custom_call.1} parent=1 // pred_check_branch
      %17 = sbr.rel (0) target = $region9
    $region8: #{tpu_custom_call.1} parent=1 // pred_region
      _
    $region9: #{tpu_custom_call.1} parent=1 // pred_fallthru
      _
    // Predicated region
    $region10: #{tpu_custom_call.1} parent=1 // pred_check
      _
    $region11: #{tpu_custom_call.1} parent=1 // pred_check_branch
      %19 = sbr.rel (0) target = $region13
    $region12: #{tpu_custom_call.1} parent=1 // pred_region
      _
    $region13: #{tpu_custom_call.1} parent=1 // pred_fallthru
      _
    // Predicated region
    $region14: #{tpu_custom_call.1} parent=1 // pred_check
      _
    $region15: #{tpu_custom_call.1} parent=1 // pred_check_branch
      %21 = sbr.rel (0) target = $region17
    $region16: #{tpu_custom_call.1} parent=1 // pred_region
      _
    $region17: #{tpu_custom_call.1} parent=1 // pred_fallthru
      _
    // Predicated region
    $region18: #{tpu_custom_call.1} parent=1 // pred_check
      _
    $region19: #{tpu_custom_call.1} parent=1 // pred_check_branch
      %23 = sbr.rel (0) target = $region21
    $region20: #{tpu_custom_call.1} parent=1 // pred_region
      %25 = vsyncadd [#allocation4], 0
      %s26 = sshll.u32 %s4, 4
      %s27 = int_to_ptr.hbm [resolvable:$true] %s26
      %s28 = sshll.u32 [#allocation3], 4
      %s29 = int_to_ptr.vmem [resolvable:$true] %s28
      %34 = dma.hbm_to_vmem [thread:$0]  %s27, 512, %s29, [#allocation4], 128, 128, 8
    $region21: #{tpu_custom_call.1} parent=1 // pred_fallthru
      _
    // Predicated region
    $region22: #{tpu_custom_call.1} parent=1 // pred_check
      _
    $region23: #{tpu_custom_call.1} parent=1 // pred_check_branch
      %36 = sbr.rel (0) target = $region25
    $region24: #{tpu_custom_call.1} parent=1 // pred_region
      _
    $region25: #{tpu_custom_call.1} parent=1 // pred_fallthru
      _
    // Predicated region
    $region26: #{tpu_custom_call.1} parent=1 // pred_check
      _
    $region27: #{tpu_custom_call.1} parent=1 // pred_check_branch
      %38 = sbr.rel (0) target = $region29
    $region28: #{tpu_custom_call.1} parent=1 // pred_region
      %40 = dma.done [#allocation4], 512
    $region29: #{tpu_custom_call.1} parent=1 // pred_fallthru
      _
    %v41 = vld [vmem:[%s1] sm:$0x1]
    %v42 = vld [vmem:[%s2] sm:$0x1]
    %v43 = vlaneseq
    %v44 = vshrl.u32 %v43, 7
    %v45 = vadd.s32 %v44, 8
    %v46 = vadd.s32 %v44, 16
    %v47 = vadd.s32 %v44, 24
    %v48 = vperm.slane %v41, 0
    %vm49 = vcmp.eq.s32.totalorder %v44, %v48
    %vm50 = vcmp.eq.s32.totalorder %v45, %v48
    %vm51 = vcmp.eq.s32.totalorder %v46, %v48
    %vm52 = vcmp.eq.s32.totalorder %v47, %v48
    %v53 = vsel %vm49, 1, 0
    %v54 = vsel %vm50, 1, 0
    %v55 = vsel %vm51, 1, 0
    %v56 = vsel %vm52, 1, 0
    %v57 = vcvt.s32.f32 %v53
    %v58 = vcvt.s32.f32 %v54
    %v59 = vcvt.s32.f32 %v55
    %v60 = vcvt.s32.f32 %v56
    %v61 = vadd.s32 %v44, 32
    %v62 = vadd.s32 %v44, 40
    %v63 = vadd.s32 %v44, 48
    %v64 = vadd.s32 %v44, 56
    %v65 = vperm.slane %v42, 0
    %vm66 = vcmp.eq.s32.totalorder %v44, %v65
    %vm67 = vcmp.eq.s32.totalorder %v45, %v65
    %vm68 = vcmp.eq.s32.totalorder %v46, %v65
    %vm69 = vcmp.eq.s32.totalorder %v47, %v65
    %vm70 = vcmp.eq.s32.totalorder %v61, %v65
    %vm71 = vcmp.eq.s32.totalorder %v62, %v65
    %vm72 = vcmp.eq.s32.totalorder %v63, %v65
    %vm73 = vcmp.eq.s32.totalorder %v64, %v65
    %v74 = vsel %vm66, 1, 0
    %v75 = vsel %vm67, 1, 0
    %v76 = vsel %vm68, 1, 0
    %v77 = vsel %vm69, 1, 0
    %v78 = vsel %vm70, 1, 0
    %v79 = vsel %vm71, 1, 0
    %v80 = vsel %vm72, 1, 0
    %v81 = vsel %vm73, 1, 0
    %v82 = vcvt.s32.f32 %v74
    %v83 = vcvt.s32.f32 %v75
    %v84 = vcvt.s32.f32 %v76
    %v85 = vcvt.s32.f32 %v77
    %v86 = vcvt.s32.f32 %v78
    %v87 = vcvt.s32.f32 %v79
    %v88 = vcvt.s32.f32 %v80
    %v89 = vcvt.s32.f32 %v81
    %v90 = vld [vmem:[%s3] sm:$0xff]
    %v91 = vld [vmem:[%s3 + $0x8] sm:$0xff]
    %v92 = vld [vmem:[%s3 + $0x10] sm:$0xff]
    %v93 = vld [vmem:[%s3 + $0x18] sm:$0xff]
    %vm94 = vcmask 261120
    %v96 = vsel %vm94, %v90, 0
    %v99 = vsel %vm94, %v91, 0
    %v102 = vsel %vm94, %v92, 0
    %v105 = vsel %vm94, %v93, 0
    %107 = vmatpush.msra.mxu0 0.0
    %108 = vmatpush.msra.mxu0 0.0
    %109 = vmatpush.msra.mxu0 0.0
    %110 = vmatpush.msra.mxu0 0.0
    %111 = vmatpush.msra.mxu0 0.0
    %112 = vmatpush.msra.mxu0 0.0
    %113 = vmatpush.msra.mxu0 0.0
    %114 = vmatpush.msra.mxu0 0.0
    %115 = vmatpush.msra.mxu0 0.0
    %116 = vmatpush.msra.mxu0 0.0
    %117 = vmatpush.msra.mxu0 0.0
    %118 = vmatpush.msra.mxu0 0.0
    %v119 = vand.u32 %v60, 4294901760
    %120 = vmatpush.msra.mxu0 %v119
    %v121 = vand.u32 %v59, 4294901760
    %122 = vmatpush.msra.mxu0 %v121
    %v123 = vand.u32 %v58, 4294901760
    %124 = vmatpush.msra.mxu0 %v123
    %v125 = vand.u32 %v57, 4294901760
    %126 = vmatpush.msra.mxu0 %v125
    %v127 = vand.u32 %v96, 4294901760
    %v128 = vsub.f32 %v96, %v127
    %v129 = vand.u32 %v128, 4294901760
    %v130 = vsub.f32 %v128, %v129
    %v131 = vand.u32 %v130, 4294901760
    %132 = vmatmul.f32.gmra.mxu0 %v131
    %v133 = vpop.f32.mrf.mxu0
    %v134 = vadd.f32 0.0, %v133
    %v135 = vand.u32 %v99, 4294901760
    %v136 = vsub.f32 %v99, %v135
    %v137 = vand.u32 %v136, 4294901760
    %v138 = vsub.f32 %v136, %v137
    %v139 = vand.u32 %v138, 4294901760
    %140 = vmatmul.f32.gmra.mxu0 %v139
    %v141 = vpop.f32.mrf.mxu0
    %v142 = vadd.f32 0.0, %v141
    %v143 = vand.u32 %v102, 4294901760
    %v144 = vsub.f32 %v102, %v143
    %v145 = vand.u32 %v144, 4294901760
    %v146 = vsub.f32 %v144, %v145
    %v147 = vand.u32 %v146, 4294901760
    %148 = vmatmul.f32.gmra.mxu0 %v147
    %v149 = vpop.f32.mrf.mxu0
    %v150 = vadd.f32 0.0, %v149
    %v151 = vand.u32 %v105, 4294901760
    %v152 = vsub.f32 %v105, %v151
    %v153 = vand.u32 %v152, 4294901760
    %v154 = vsub.f32 %v152, %v153
    %v155 = vand.u32 %v154, 4294901760
    %156 = vmatmul.f32.gmra.mxu0 %v155
    %v157 = vpop.f32.mrf.mxu0
    %v158 = vadd.f32 0.0, %v157
    %159 = vdwg.mxu0
    %160 = vmatpush.msra.mxu0 0.0
    %161 = vmatpush.msra.mxu0 0.0
    %162 = vmatpush.msra.mxu0 0.0
    %163 = vmatpush.msra.mxu0 0.0
    %164 = vmatpush.msra.mxu0 0.0
    %165 = vmatpush.msra.mxu0 0.0
    %166 = vmatpush.msra.mxu0 0.0
    %167 = vmatpush.msra.mxu0 0.0
    %168 = vmatpush.msra.mxu0 0.0
    %169 = vmatpush.msra.mxu0 0.0
    %170 = vmatpush.msra.mxu0 0.0
    %171 = vmatpush.msra.mxu0 0.0
    %v172 = vand.u32 %v60, 4294901760
    %v173 = vsub.f32 %v60, %v172
    %v174 = vand.u32 %v173, 4294901760
    %v175 = vsub.f32 %v173, %v174
    %v176 = vand.u32 %v175, 4294901760
    %177 = vmatpush.msra.mxu0 %v176
    %v178 = vand.u32 %v59, 4294901760
    %v179 = vsub.f32 %v59, %v178
    %v180 = vand.u32 %v179, 4294901760
    %v181 = vsub.f32 %v179, %v180
    %v182 = vand.u32 %v181, 4294901760
    %183 = vmatpush.msra.mxu0 %v182
    %v184 = vand.u32 %v58, 4294901760
    %v185 = vsub.f32 %v58, %v184
    %v186 = vand.u32 %v185, 4294901760
    %v187 = vsub.f32 %v185, %v186
    %v188 = vand.u32 %v187, 4294901760
    %189 = vmatpush.msra.mxu0 %v188
    %v190 = vand.u32 %v57, 4294901760
    %v191 = vsub.f32 %v57, %v190
    %v192 = vand.u32 %v191, 4294901760
    %v193 = vsub.f32 %v191, %v192
    %v194 = vand.u32 %v193, 4294901760
    %195 = vmatpush.msra.mxu0 %v194
    %v196 = vand.u32 %v96, 4294901760
    %197 = vmatmul.f32.gmra.mxu0 %v196
    %v198 = vpop.f32.mrf.mxu0
    %v199 = vadd.f32 %v134, %v198
    %v200 = vand.u32 %v99, 4294901760
    %201 = vmatmul.f32.gmra.mxu0 %v200
    %v202 = vpop.f32.mrf.mxu0
    %v203 = vadd.f32 %v142, %v202
    %v204 = vand.u32 %v102, 4294901760
    %205 = vmatmul.f32.gmra.mxu0 %v204
    %v206 = vpop.f32.mrf.mxu0
    %v207 = vadd.f32 %v150, %v206
    %v208 = vand.u32 %v105, 4294901760
    %209 = vmatmul.f32.gmra.mxu0 %v208
    %v210 = vpop.f32.mrf.mxu0
    %v211 = vadd.f32 %v158, %v210
    %212 = vdwg.mxu0
    %213 = vmatpush.msra.mxu0 0.0
    %214 = vmatpush.msra.mxu0 0.0
    %215 = vmatpush.msra.mxu0 0.0
    %216 = vmatpush.msra.mxu0 0.0
    %217 = vmatpush.msra.mxu0 0.0
    %218 = vmatpush.msra.mxu0 0.0
    %219 = vmatpush.msra.mxu0 0.0
    %220 = vmatpush.msra.mxu0 0.0
    %221 = vmatpush.msra.mxu0 0.0
    %222 = vmatpush.msra.mxu0 0.0
    %223 = vmatpush.msra.mxu0 0.0
    %224 = vmatpush.msra.mxu0 0.0
    %v225 = vand.u32 %v60, 4294901760
    %v226 = vsub.f32 %v60, %v225
    %227 = vmatpush.msra.mxu0 %v226
    %v228 = vand.u32 %v59, 4294901760
    %v229 = vsub.f32 %v59, %v228
    %230 = vmatpush.msra.mxu0 %v229
    %v231 = vand.u32 %v58, 4294901760
    %v232 = vsub.f32 %v58, %v231
    %233 = vmatpush.msra.mxu0 %v232
    %v234 = vand.u32 %v57, 4294901760
    %v235 = vsub.f32 %v57, %v234
    %236 = vmatpush.msra.mxu0 %v235
    %v237 = vand.u32 %v96, 4294901760
    %v238 = vsub.f32 %v96, %v237
    %239 = vmatmul.f32.gmra.mxu0 %v238
    %v240 = vpop.f32.mrf.mxu0
    %v241 = vadd.f32 %v199, %v240
    %v242 = vand.u32 %v99, 4294901760
    %v243 = vsub.f32 %v99, %v242
    %244 = vmatmul.f32.gmra.mxu0 %v243
    %v245 = vpop.f32.mrf.mxu0
    %v246 = vadd.f32 %v203, %v245
    %v247 = vand.u32 %v102, 4294901760
    %v248 = vsub.f32 %v102, %v247
    %249 = vmatmul.f32.gmra.mxu0 %v248
    %v250 = vpop.f32.mrf.mxu0
    %v251 = vadd.f32 %v207, %v250
    %v252 = vand.u32 %v105, 4294901760
    %v253 = vsub.f32 %v105, %v252
    %254 = vmatmul.f32.gmra.mxu0 %v253
    %v255 = vpop.f32.mrf.mxu0
    %v256 = vadd.f32 %v211, %v255
    %257 = vdwg.mxu0
    %258 = vmatpush.msra.mxu0 0.0
    %259 = vmatpush.msra.mxu0 0.0
    %260 = vmatpush.msra.mxu0 0.0
    %261 = vmatpush.msra.mxu0 0.0
    %262 = vmatpush.msra.mxu0 0.0
    %263 = vmatpush.msra.mxu0 0.0
    %264 = vmatpush.msra.mxu0 0.0
    %265 = vmatpush.msra.mxu0 0.0
    %266 = vmatpush.msra.mxu0 0.0
    %267 = vmatpush.msra.mxu0 0.0
    %268 = vmatpush.msra.mxu0 0.0
    %269 = vmatpush.msra.mxu0 0.0
    %v270 = vand.u32 %v60, 4294901760
    %271 = vmatpush.msra.mxu0 %v270
    %v272 = vand.u32 %v59, 4294901760
    %273 = vmatpush.msra.mxu0 %v272
    %v274 = vand.u32 %v58, 4294901760
    %275 = vmatpush.msra.mxu0 %v274
    %v276 = vand.u32 %v57, 4294901760
    %277 = vmatpush.msra.mxu0 %v276
    %v278 = vand.u32 %v96, 4294901760
    %v279 = vsub.f32 %v96, %v278
    %v280 = vand.u32 %v279, 4294901760
    %281 = vmatmul.f32.gmra.mxu0 %v280
    %v282 = vpop.f32.mrf.mxu0
    %v283 = vadd.f32 %v241, %v282
    %v284 = vand.u32 %v99, 4294901760
    %v285 = vsub.f32 %v99, %v284
    %v286 = vand.u32 %v285, 4294901760
    %287 = vmatmul.f32.gmra.mxu0 %v286
    %v288 = vpop.f32.mrf.mxu0
    %v289 = vadd.f32 %v246, %v288
    %v290 = vand.u32 %v102, 4294901760
    %v291 = vsub.f32 %v102, %v290
    %v292 = vand.u32 %v291, 4294901760
    %293 = vmatmul.f32.gmra.mxu0 %v292
    %v294 = vpop.f32.mrf.mxu0
    %v295 = vadd.f32 %v251, %v294
    %v296 = vand.u32 %v105, 4294901760
    %v297 = vsub.f32 %v105, %v296
    %v298 = vand.u32 %v297, 4294901760
    %299 = vmatmul.f32.gmra.mxu0 %v298
    %v300 = vpop.f32.mrf.mxu0
    %v301 = vadd.f32 %v256, %v300
    %302 = vdwg.mxu0
    %303 = vmatpush.msra.mxu0 0.0
    %304 = vmatpush.msra.mxu0 0.0
    %305 = vmatpush.msra.mxu0 0.0
    %306 = vmatpush.msra.mxu0 0.0
    %307 = vmatpush.msra.mxu0 0.0
    %308 = vmatpush.msra.mxu0 0.0
    %309 = vmatpush.msra.mxu0 0.0
    %310 = vmatpush.msra.mxu0 0.0
    %311 = vmatpush.msra.mxu0 0.0
    %312 = vmatpush.msra.mxu0 0.0
    %313 = vmatpush.msra.mxu0 0.0
    %314 = vmatpush.msra.mxu0 0.0
    %v315 = vand.u32 %v60, 4294901760
    %v316 = vsub.f32 %v60, %v315
    %v317 = vand.u32 %v316, 4294901760
    %318 = vmatpush.msra.mxu0 %v317
    %v319 = vand.u32 %v59, 4294901760
    %v320 = vsub.f32 %v59, %v319
    %v321 = vand.u32 %v320, 4294901760
    %322 = vmatpush.msra.mxu0 %v321
    %v323 = vand.u32 %v58, 4294901760
    %v324 = vsub.f32 %v58, %v323
    %v325 = vand.u32 %v324, 4294901760
    %326 = vmatpush.msra.mxu0 %v325
    %v327 = vand.u32 %v57, 4294901760
    %v328 = vsub.f32 %v57, %v327
    %v329 = vand.u32 %v328, 4294901760
    %330 = vmatpush.msra.mxu0 %v329
    %v331 = vand.u32 %v96, 4294901760
    %332 = vmatmul.f32.gmra.mxu0 %v331
    %v333 = vpop.f32.mrf.mxu0
    %v334 = vadd.f32 %v283, %v333
    %v335 = vand.u32 %v99, 4294901760
    %336 = vmatmul.f32.gmra.mxu0 %v335
    %v337 = vpop.f32.mrf.mxu0
    %v338 = vadd.f32 %v289, %v337
    %v339 = vand.u32 %v102, 4294901760
    %340 = vmatmul.f32.gmra.mxu0 %v339
    %v341 = vpop.f32.mrf.mxu0
    %v342 = vadd.f32 %v295, %v341
    %v343 = vand.u32 %v105, 4294901760
    %344 = vmatmul.f32.gmra.mxu0 %v343
    %v345 = vpop.f32.mrf.mxu0
    %v346 = vadd.f32 %v301, %v345
    %347 = vdwg.mxu0
    %348 = vmatpush.msra.mxu0 0.0
    %349 = vmatpush.msra.mxu0 0.0
    %350 = vmatpush.msra.mxu0 0.0
    %351 = vmatpush.msra.mxu0 0.0
    %352 = vmatpush.msra.mxu0 0.0
    %353 = vmatpush.msra.mxu0 0.0
    %354 = vmatpush.msra.mxu0 0.0
    %355 = vmatpush.msra.mxu0 0.0
    %356 = vmatpush.msra.mxu0 0.0
    %357 = vmatpush.msra.mxu0 0.0
    %358 = vmatpush.msra.mxu0 0.0
    %359 = vmatpush.msra.mxu0 0.0
    %v360 = vand.u32 %v60, 4294901760
    %361 = vmatpush.msra.mxu0 %v360
    %v362 = vand.u32 %v59, 4294901760
    %363 = vmatpush.msra.mxu0 %v362
    %v364 = vand.u32 %v58, 4294901760
    %365 = vmatpush.msra.mxu0 %v364
    %v366 = vand.u32 %v57, 4294901760
    %367 = vmatpush.msra.mxu0 %v366
    %v368 = vand.u32 %v96, 4294901760
    %369 = vmatmul.f32.gmra.mxu0 %v368
    %v370 = vpop.f32.mrf.mxu0
    %v371 = vadd.f32 %v334, %v370
    %v372 = vand.u32 %v99, 4294901760
    %373 = vmatmul.f32.gmra.mxu0 %v372
    %v374 = vpop.f32.mrf.mxu0
    %v375 = vadd.f32 %v338, %v374
    %v376 = vand.u32 %v102, 4294901760
    %377 = vmatmul.f32.gmra.mxu0 %v376
    %v378 = vpop.f32.mrf.mxu0
    %v379 = vadd.f32 %v342, %v378
    %v380 = vand.u32 %v105, 4294901760
    %381 = vmatmul.f32.gmra.mxu0 %v380
    %v382 = vpop.f32.mrf.mxu0
    %v383 = vadd.f32 %v346, %v382
    %384 = vdwg.mxu0
    %v385 = vld [vmem:[#allocation3] sm:$0xff]
    %v386 = vld [vmem:[#allocation3 + $0x8] sm:$0xff]
    %v387 = vld [vmem:[#allocation3 + $0x10] sm:$0xff]
    %v388 = vld [vmem:[#allocation3 + $0x18] sm:$0xff]
    %vm389 = vcmask 523264
    %v391 = vsel %vm389, %v385, 0
    %v394 = vsel %vm389, %v386, 0
    %v397 = vsel %vm389, %v387, 0
    %v400 = vsel %vm389, %v388, 0
    %402 = vmatpush.msra.mxu0 0.0
    %403 = vmatpush.msra.mxu0 0.0
    %404 = vmatpush.msra.mxu0 0.0
    %405 = vmatpush.msra.mxu0 0.0
    %406 = vmatpush.msra.mxu0 0.0
    %407 = vmatpush.msra.mxu0 0.0
    %408 = vmatpush.msra.mxu0 0.0
    %409 = vmatpush.msra.mxu0 0.0
    %v410 = vand.u32 %v89, 4294901760
    %411 = vmatpush.msra.mxu0 %v410
    %v412 = vand.u32 %v88, 4294901760
    %413 = vmatpush.msra.mxu0 %v412
    %v414 = vand.u32 %v87, 4294901760
    %415 = vmatpush.msra.mxu0 %v414
    %v416 = vand.u32 %v86, 4294901760
    %417 = vmatpush.msra.mxu0 %v416
    %v418 = vand.u32 %v85, 4294901760
    %419 = vmatpush.msra.mxu0 %v418
    %v420 = vand.u32 %v84, 4294901760
    %421 = vmatpush.msra.mxu0 %v420
    %v422 = vand.u32 %v83, 4294901760
    %423 = vmatpush.msra.mxu0 %v422
    %v424 = vand.u32 %v82, 4294901760
    %425 = vmatpush.msra.mxu0 %v424
    %v426 = vand.u32 %v391, 4294901760
    %v427 = vsub.f32 %v391, %v426
    %v428 = vand.u32 %v427, 4294901760
    %v429 = vsub.f32 %v427, %v428
    %v430 = vand.u32 %v429, 4294901760
    %431 = vmatmul.f32.gmra.mxu0 %v430
    %v432 = vpop.f32.mrf.mxu0
    %v433 = vadd.f32 0.0, %v432
    %v434 = vand.u32 %v394, 4294901760
    %v435 = vsub.f32 %v394, %v434
    %v436 = vand.u32 %v435, 4294901760
    %v437 = vsub.f32 %v435, %v436
    %v438 = vand.u32 %v437, 4294901760
    %439 = vmatmul.f32.gmra.mxu0 %v438
    %v440 = vpop.f32.mrf.mxu0
    %v441 = vadd.f32 0.0, %v440
    %v442 = vand.u32 %v397, 4294901760
    %v443 = vsub.f32 %v397, %v442
    %v444 = vand.u32 %v443, 4294901760
    %v445 = vsub.f32 %v443, %v444
    %v446 = vand.u32 %v445, 4294901760
    %447 = vmatmul.f32.gmra.mxu0 %v446
    %v448 = vpop.f32.mrf.mxu0
    %v449 = vadd.f32 0.0, %v448
    %v450 = vand.u32 %v400, 4294901760
    %v451 = vsub.f32 %v400, %v450
    %v452 = vand.u32 %v451, 4294901760
    %v453 = vsub.f32 %v451, %v452
    %v454 = vand.u32 %v453, 4294901760
    %455 = vmatmul.f32.gmra.mxu0 %v454
    %v456 = vpop.f32.mrf.mxu0
    %v457 = vadd.f32 0.0, %v456
    %458 = vdwg.mxu0
    %459 = vmatpush.msra.mxu0 0.0
    %460 = vmatpush.msra.mxu0 0.0
    %461 = vmatpush.msra.mxu0 0.0
    %462 = vmatpush.msra.mxu0 0.0
    %463 = vmatpush.msra.mxu0 0.0
    %464 = vmatpush.msra.mxu0 0.0
    %465 = vmatpush.msra.mxu0 0.0
    %466 = vmatpush.msra.mxu0 0.0
    %v467 = vand.u32 %v89, 4294901760
    %v468 = vsub.f32 %v89, %v467
    %v469 = vand.u32 %v468, 4294901760
    %v470 = vsub.f32 %v468, %v469
    %v471 = vand.u32 %v470, 4294901760
    %472 = vmatpush.msra.mxu0 %v471
    %v473 = vand.u32 %v88, 4294901760
    %v474 = vsub.f32 %v88, %v473
    %v475 = vand.u32 %v474, 4294901760
    %v476 = vsub.f32 %v474, %v475
    %v477 = vand.u32 %v476, 4294901760
    %478 = vmatpush.msra.mxu0 %v477
    %v479 = vand.u32 %v87, 4294901760
    %v480 = vsub.f32 %v87, %v479
    %v481 = vand.u32 %v480, 4294901760
    %v482 = vsub.f32 %v480, %v481
    %v483 = vand.u32 %v482, 4294901760
    %484 = vmatpush.msra.mxu0 %v483
    %v485 = vand.u32 %v86, 4294901760
    %v486 = vsub.f32 %v86, %v485
    %v487 = vand.u32 %v486, 4294901760
    %v488 = vsub.f32 %v486, %v487
    %v489 = vand.u32 %v488, 4294901760
    %490 = vmatpush.msra.mxu0 %v489
    %v491 = vand.u32 %v85, 4294901760
    %v492 = vsub.f32 %v85, %v491
    %v493 = vand.u32 %v492, 4294901760
    %v494 = vsub.f32 %v492, %v493
    %v495 = vand.u32 %v494, 4294901760
    %496 = vmatpush.msra.mxu0 %v495
    %v497 = vand.u32 %v84, 4294901760
    %v498 = vsub.f32 %v84, %v497
    %v499 = vand.u32 %v498, 4294901760
    %v500 = vsub.f32 %v498, %v499
    %v501 = vand.u32 %v500, 4294901760
    %502 = vmatpush.msra.mxu0 %v501
    %v503 = vand.u32 %v83, 4294901760
    %v504 = vsub.f32 %v83, %v503
    %v505 = vand.u32 %v504, 4294901760
    %v506 = vsub.f32 %v504, %v505
    %v507 = vand.u32 %v506, 4294901760
    %508 = vmatpush.msra.mxu0 %v507
    %v509 = vand.u32 %v82, 4294901760
    %v510 = vsub.f32 %v82, %v509
    %v511 = vand.u32 %v510, 4294901760
    %v512 = vsub.f32 %v510, %v511
    %v513 = vand.u32 %v512, 4294901760
    %514 = vmatpush.msra.mxu0 %v513
    %v515 = vand.u32 %v391, 4294901760
    %516 = vmatmul.f32.gmra.mxu0 %v515
    %v517 = vpop.f32.mrf.mxu0
    %v518 = vadd.f32 %v433, %v517
    %v519 = vand.u32 %v394, 4294901760
    %520 = vmatmul.f32.gmra.mxu0 %v519
    %v521 = vpop.f32.mrf.mxu0
    %v522 = vadd.f32 %v441, %v521
    %v523 = vand.u32 %v397, 4294901760
    %524 = vmatmul.f32.gmra.mxu0 %v523
    %v525 = vpop.f32.mrf.mxu0
    %v526 = vadd.f32 %v449, %v525
    %v527 = vand.u32 %v400, 4294901760
    %528 = vmatmul.f32.gmra.mxu0 %v527
    %v529 = vpop.f32.mrf.mxu0
    %v530 = vadd.f32 %v457, %v529
    %531 = vdwg.mxu0
    %532 = vmatpush.msra.mxu0 0.0
    %533 = vmatpush.msra.mxu0 0.0
    %534 = vmatpush.msra.mxu0 0.0
    %535 = vmatpush.msra.mxu0 0.0
    %536 = vmatpush.msra.mxu0 0.0
    %537 = vmatpush.msra.mxu0 0.0
    %538 = vmatpush.msra.mxu0 0.0
    %539 = vmatpush.msra.mxu0 0.0
    %v540 = vand.u32 %v89, 4294901760
    %v541 = vsub.f32 %v89, %v540
    %542 = vmatpush.msra.mxu0 %v541
    %v543 = vand.u32 %v88, 4294901760
    %v544 = vsub.f32 %v88, %v543
    %545 = vmatpush.msra.mxu0 %v544
    %v546 = vand.u32 %v87, 4294901760
    %v547 = vsub.f32 %v87, %v546
    %548 = vmatpush.msra.mxu0 %v547
    %v549 = vand.u32 %v86, 4294901760
    %v550 = vsub.f32 %v86, %v549
    %551 = vmatpush.msra.mxu0 %v550
    %v552 = vand.u32 %v85, 4294901760
    %v553 = vsub.f32 %v85, %v552
    %554 = vmatpush.msra.mxu0 %v553
    %v555 = vand.u32 %v84, 4294901760
    %v556 = vsub.f32 %v84, %v555
    %557 = vmatpush.msra.mxu0 %v556
    %v558 = vand.u32 %v83, 4294901760
    %v559 = vsub.f32 %v83, %v558
    %560 = vmatpush.msra.mxu0 %v559
    %v561 = vand.u32 %v82, 4294901760
    %v562 = vsub.f32 %v82, %v561
    %563 = vmatpush.msra.mxu0 %v562
    %v564 = vand.u32 %v391, 4294901760
    %v565 = vsub.f32 %v391, %v564
    %566 = vmatmul.f32.gmra.mxu0 %v565
    %v567 = vpop.f32.mrf.mxu0
    %v568 = vadd.f32 %v518, %v567
    %v569 = vand.u32 %v394, 4294901760
    %v570 = vsub.f32 %v394, %v569
    %571 = vmatmul.f32.gmra.mxu0 %v570
    %v572 = vpop.f32.mrf.mxu0
    %v573 = vadd.f32 %v522, %v572
    %v574 = vand.u32 %v397, 4294901760
    %v575 = vsub.f32 %v397, %v574
    %576 = vmatmul.f32.gmra.mxu0 %v575
    %v577 = vpop.f32.mrf.mxu0
    %v578 = vadd.f32 %v526, %v577
    %v579 = vand.u32 %v400, 4294901760
    %v580 = vsub.f32 %v400, %v579
    %581 = vmatmul.f32.gmra.mxu0 %v580
    %v582 = vpop.f32.mrf.mxu0
    %v583 = vadd.f32 %v530, %v582
    %584 = vdwg.mxu0
    %585 = vmatpush.msra.mxu0 0.0
    %586 = vmatpush.msra.mxu0 0.0
    %587 = vmatpush.msra.mxu0 0.0
    %588 = vmatpush.msra.mxu0 0.0
    %589 = vmatpush.msra.mxu0 0.0
    %590 = vmatpush.msra.mxu0 0.0
    %591 = vmatpush.msra.mxu0 0.0
    %592 = vmatpush.msra.mxu0 0.0
    %v593 = vand.u32 %v89, 4294901760
    %594 = vmatpush.msra.mxu0 %v593
    %v595 = vand.u32 %v88, 4294901760
    %596 = vmatpush.msra.mxu0 %v595
    %v597 = vand.u32 %v87, 4294901760
    %598 = vmatpush.msra.mxu0 %v597
    %v599 = vand.u32 %v86, 4294901760
    %600 = vmatpush.msra.mxu0 %v599
    %v601 = vand.u32 %v85, 4294901760
    %602 = vmatpush.msra.mxu0 %v601
    %v603 = vand.u32 %v84, 4294901760
    %604 = vmatpush.msra.mxu0 %v603
    %v605 = vand.u32 %v83, 4294901760
    %606 = vmatpush.msra.mxu0 %v605
    %v607 = vand.u32 %v82, 4294901760
    %608 = vmatpush.msra.mxu0 %v607
    %v609 = vand.u32 %v391, 4294901760
    %v610 = vsub.f32 %v391, %v609
    %v611 = vand.u32 %v610, 4294901760
    %612 = vmatmul.f32.gmra.mxu0 %v611
    %v613 = vpop.f32.mrf.mxu0
    %v614 = vadd.f32 %v568, %v613
    %v615 = vand.u32 %v394, 4294901760
    %v616 = vsub.f32 %v394, %v615
    %v617 = vand.u32 %v616, 4294901760
    %618 = vmatmul.f32.gmra.mxu0 %v617
    %v619 = vpop.f32.mrf.mxu0
    %v620 = vadd.f32 %v573, %v619
    %v621 = vand.u32 %v397, 4294901760
    %v622 = vsub.f32 %v397, %v621
    %v623 = vand.u32 %v622, 4294901760
    %624 = vmatmul.f32.gmra.mxu0 %v623
    %v625 = vpop.f32.mrf.mxu0
    %v626 = vadd.f32 %v578, %v625
    %v627 = vand.u32 %v400, 4294901760
    %v628 = vsub.f32 %v400, %v627
    %v629 = vand.u32 %v628, 4294901760
    %630 = vmatmul.f32.gmra.mxu0 %v629
    %v631 = vpop.f32.mrf.mxu0
    %v632 = vadd.f32 %v583, %v631
    %633 = vdwg.mxu0
    %634 = vmatpush.msra.mxu0 0.0
    %635 = vmatpush.msra.mxu0 0.0
    %636 = vmatpush.msra.mxu0 0.0
    %637 = vmatpush.msra.mxu0 0.0
    %638 = vmatpush.msra.mxu0 0.0
    %639 = vmatpush.msra.mxu0 0.0
    %640 = vmatpush.msra.mxu0 0.0
    %641 = vmatpush.msra.mxu0 0.0
    %v642 = vand.u32 %v89, 4294901760
    %v643 = vsub.f32 %v89, %v642
    %v644 = vand.u32 %v643, 4294901760
    %645 = vmatpush.msra.mxu0 %v644
    %v646 = vand.u32 %v88, 4294901760
    %v647 = vsub.f32 %v88, %v646
    %v648 = vand.u32 %v647, 4294901760
    %649 = vmatpush.msra.mxu0 %v648
    %v650 = vand.u32 %v87, 4294901760
    %v651 = vsub.f32 %v87, %v650
    %v652 = vand.u32 %v651, 4294901760
    %653 = vmatpush.msra.mxu0 %v652
    %v654 = vand.u32 %v86, 4294901760
    %v655 = vsub.f32 %v86, %v654
    %v656 = vand.u32 %v655, 4294901760
    %657 = vmatpush.msra.mxu0 %v656
    %v658 = vand.u32 %v85, 4294901760
    %v659 = vsub.f32 %v85, %v658
    %v660 = vand.u32 %v659, 4294901760
    %661 = vmatpush.msra.mxu0 %v660
    %v662 = vand.u32 %v84, 4294901760
    %v663 = vsub.f32 %v84, %v662
    %v664 = vand.u32 %v663, 4294901760
    %665 = vmatpush.msra.mxu0 %v664
    %v666 = vand.u32 %v83, 4294901760
    %v667 = vsub.f32 %v83, %v666
    %v668 = vand.u32 %v667, 4294901760
    %669 = vmatpush.msra.mxu0 %v668
    %v670 = vand.u32 %v82, 4294901760
    %v671 = vsub.f32 %v82, %v670
    %v672 = vand.u32 %v671, 4294901760
    %673 = vmatpush.msra.mxu0 %v672
    %v674 = vand.u32 %v391, 4294901760
    %675 = vmatmul.f32.gmra.mxu0 %v674
    %v676 = vpop.f32.mrf.mxu0
    %v677 = vadd.f32 %v614, %v676
    %v678 = vand.u32 %v394, 4294901760
    %679 = vmatmul.f32.gmra.mxu0 %v678
    %v680 = vpop.f32.mrf.mxu0
    %v681 = vadd.f32 %v620, %v680
    %v682 = vand.u32 %v397, 4294901760
    %683 = vmatmul.f32.gmra.mxu0 %v682
    %v684 = vpop.f32.mrf.mxu0
    %v685 = vadd.f32 %v626, %v684
    %v686 = vand.u32 %v400, 4294901760
    %687 = vmatmul.f32.gmra.mxu0 %v686
    %v688 = vpop.f32.mrf.mxu0
    %v689 = vadd.f32 %v632, %v688
    %690 = vdwg.mxu0
    %691 = vmatpush.msra.mxu0 0.0
    %692 = vmatpush.msra.mxu0 0.0
    %693 = vmatpush.msra.mxu0 0.0
    %694 = vmatpush.msra.mxu0 0.0
    %695 = vmatpush.msra.mxu0 0.0
    %696 = vmatpush.msra.mxu0 0.0
    %697 = vmatpush.msra.mxu0 0.0
    %698 = vmatpush.msra.mxu0 0.0
    %v699 = vand.u32 %v89, 4294901760
    %700 = vmatpush.msra.mxu0 %v699
    %v701 = vand.u32 %v88, 4294901760
    %702 = vmatpush.msra.mxu0 %v701
    %v703 = vand.u32 %v87, 4294901760
    %704 = vmatpush.msra.mxu0 %v703
    %v705 = vand.u32 %v86, 4294901760
    %706 = vmatpush.msra.mxu0 %v705
    %v707 = vand.u32 %v85, 4294901760
    %708 = vmatpush.msra.mxu0 %v707
    %v709 = vand.u32 %v84, 4294901760
    %710 = vmatpush.msra.mxu0 %v709
    %v711 = vand.u32 %v83, 4294901760
    %712 = vmatpush.msra.mxu0 %v711
    %v713 = vand.u32 %v82, 4294901760
    %714 = vmatpush.msra.mxu0 %v713
    %v715 = vand.u32 %v391, 4294901760
    %716 = vmatmul.f32.gmra.mxu0 %v715
    %v717 = vpop.f32.mrf.mxu0
    %v718 = vadd.f32 %v677, %v717
    %v719 = vand.u32 %v394, 4294901760
    %720 = vmatmul.f32.gmra.mxu0 %v719
    %v721 = vpop.f32.mrf.mxu0
    %v722 = vadd.f32 %v681, %v721
    %v723 = vand.u32 %v397, 4294901760
    %724 = vmatmul.f32.gmra.mxu0 %v723
    %v725 = vpop.f32.mrf.mxu0
    %v726 = vadd.f32 %v685, %v725
    %v727 = vand.u32 %v400, 4294901760
    %728 = vmatmul.f32.gmra.mxu0 %v727
    %v729 = vpop.f32.mrf.mxu0
    %v730 = vadd.f32 %v689, %v729
    %731 = vdwg.mxu0
    %v732 = vmul.f32 %v371, %v718
    %v733 = vmul.f32 %v375, %v722
    %v734 = vmul.f32 %v379, %v726
    %v735 = vmul.f32 %v383, %v730
    %v736 = vld [vmem:[%s5] sm:$0xff]
    %v737 = vld [vmem:[%s5 + $0x8] sm:$0xff]
    %v738 = vld [vmem:[%s5 + $0x10] sm:$0xff]
    %v739 = vld [vmem:[%s5 + $0x18] sm:$0xff]
    %741 = vset.pattern.permute.xlu0 0
    %742 = vperm.xlu0 %741, %v736
    %v743 = vpop.permute.xlu0 %742
    %746 = vset.pattern.permute.xlu0 0
    %747 = vperm.xlu0 %746, %v737
    %v748 = vpop.permute.xlu0 %747
    %751 = vset.pattern.permute.xlu0 0
    %752 = vperm.xlu0 %751, %v738
    %v753 = vpop.permute.xlu0 %752
    %756 = vset.pattern.permute.xlu0 0
    %757 = vperm.xlu0 %756, %v739
    %v758 = vpop.permute.xlu0 %757
    %v760 = vmul.f32 %v732, %v743
    %v761 = vmul.f32 %v733, %v748
    %v762 = vmul.f32 %v734, %v753
    %v763 = vmul.f32 %v735, %v758
    %v764 = vadd.f32 %v760, %v761
    %v765 = vadd.f32 %v764, %v762
    %v766 = vadd.f32 %v765, %v763
    %v767 = vrot.slane %v766, 4
    %v768 = vadd.f32 %v766, %v767
    %v769 = vrot.slane %v768, 2
    %v770 = vadd.f32 %v768, %v769
    %v771 = vrot.slane %v770, 1
    %v772 = vadd.f32 %v770, %v771
    %s773 = sld [smem:[#allocation2]]
    %v774 = vstv %s773
    %v775 = vadd.f32 %v772, %v774
    %v776 = vxor.u32 %v775, 2147483648
    %v777 = vmul.f32 %v776, 1.442695
    %v778 = vpow.pop %v777
    %v779 = vadd.f32 %v778, 1.0
    %v780 = vrcp.pop %v779
    %v781 = vmul.f32 %v779, %v780
    %v782 = vsub.f32 1.0, %v781
    %v783 = vmul.f32 %v780, %v782
    %v784 = vadd.f32 %v780, %v783
    %vm785 = vweird.f32 %v779
    %vm786 = vweird.f32 %v780
    %vm787 = vmor %vm785, %vm786
    %v788 = vsel %vm787, %v780, %v784
    %v789 = vand.u32 2147483647, %v779
    %vm790 = vcmp.eq.f32.partialorder %v789, 8.507059e+37
    %v791 = vand.u32 %v779, 2147483648
    %v792 = vor.u32 1.1754944e-38, %v791
    %v793 = vsel %vm790, %v792, %v788
    %v794 = vmul.f32 1.0, %v793
    %795 = vst [vmem:[#allocation6] sm:$0x1] %v794
    // Predicated region
    $region30: #{tpu_custom_call.1} parent=1 // pred_check
      _
    $region31: #{tpu_custom_call.1} parent=1 // pred_check_branch
      %797 = sbr.rel (0) target = $region33
    $region32: #{tpu_custom_call.1} parent=1 // pred_region
      %799 = vsyncadd [#allocation5], 0
      %s801 = sshll.u32 [#allocation6], 4
      %s802 = int_to_ptr.vmem [resolvable:$true] %s801
      %s803 = sshll.u32 %s6, 4
      %s804 = int_to_ptr.hbm [resolvable:$true] %s803
      %806 = dma.vmem_to_hbm [thread:$0]  %s802, 16, %s804, [#allocation5]
    $region33: #{tpu_custom_call.1} parent=1 // pred_fallthru
      _
    // Predicated region
    $region34: #{tpu_custom_call.1} parent=1 // pred_check
      _
    $region35: #{tpu_custom_call.1} parent=1 // pred_check_branch
      %808 = sbr.rel (0) target = $region37
    $region36: #{tpu_custom_call.1} parent=1 // pred_region
      %810 = dma.done [#allocation5], 16
    $region37: #{tpu_custom_call.1} parent=1 // pred_fallthru
      _
    %811 = vsyncpa [#allocation4], 1
    %812 = vsyncpa [#allocation5], 1

</llo_original>
